<compile_context>
chip_gen: v5e
topology: v5e:2x2
jax: 0.10.0
libtpu: 0.0.40
codegen_flags: <defaults>
</compile_context>

<pallas_src>
import jax
import jax.numpy as jnp
from jax.experimental import pallas as pl
from jax.experimental.pallas import tpu as pltpu


def _pg_relu_kernel(x_ref, o_ref):
    # Elementwise ReLU on the current VMEM tile (VPU). Scalar 0 constant
    # avoids materializing a broadcast zero vreg.
    o_ref[...] = jnp.maximum(x_ref[...], 0)


def _round_up(a: int, b: int) -> int:
    return -(-a // b) * b


def pg_relu(x: jax.Array) -> jax.Array:
    """Forward of PGReLU: relu(x), elementwise, any-shaped input."""
    orig_shape = x.shape
    dtype = x.dtype
    total = int(x.size)
    if total == 0:
        return x

    itemsize = jnp.dtype(dtype).itemsize
    lane = 128
    # Native sublane packing multiple: 8 for 32-bit, 16 for bf16, 32 for int8/fp8.
    sub_mult = max(8, 32 // itemsize)

    # Lane-dense width: a wide multiple of 128 (up to 1024), but not wildly
    # larger than the input itself (keeps padding small for tiny tensors).
    width = min(1024, lane * max(1, -(-total // (lane * sub_mult))))

    # Row tile sized for ~2 MiB per buffer (≈85% of HBM roofline per measured
    # sweeps). Double-buffered in + out ≈ 8 MiB resident — fits every
    # generation's scoped-VMEM budget. Round to the dtype's sublane multiple.
    target_block_bytes = 2 * 1024 * 1024
    row_bytes = width * itemsize
    desired_rows = max(
        sub_mult, (target_block_bytes // row_bytes) // sub_mult * sub_mult
    )

    rows = -(-total // width)
    tile_rows = min(desired_rows, _round_up(rows, sub_mult))

    rows_padded = _round_up(rows, tile_rows)
    padded_total = rows_padded * width

    flat = x.reshape(-1)
    if padded_total != total:
        flat = jnp.pad(flat, (0, padded_total - total))
    x2 = flat.reshape(rows_padded, width)

    grid = (rows_padded // tile_rows,)

    out2 = pl.pallas_call(
        _pg_relu_kernel,
        out_shape=jax.ShapeDtypeStruct(x2.shape, x2.dtype),
        grid_spec=pltpu.PrefetchScalarGridSpec(
            num_scalar_prefetch=0,
            grid=grid,
            in_specs=[pl.BlockSpec((tile_rows, width), lambda i: (i, 0))],
            out_specs=pl.BlockSpec((tile_rows, width), lambda i: (i, 0)),
        ),
        compiler_params=pltpu.CompilerParams(
            dimension_semantics=("parallel",),
            vmem_limit_bytes=32 * 1024 * 1024,
        ),
        cost_estimate=pl.CostEstimate(
            flops=total,
            transcendentals=0,
            bytes_accessed=2 * total * itemsize,
        ),
    )(x2)

    out_flat = out2.reshape(-1)
    if padded_total != total:
        out_flat = out_flat[:total]
    return out_flat.reshape(orig_shape)


if __name__ == "__main__":
    key = jax.random.PRNGKey(0)

    # NCHW input, same convention as PyTorch: batch=2, channels=4, 16x16 spatial.
    x = jax.random.normal(key, (2, 4, 16, 16), dtype=jnp.float32)
    y = jax.block_until_ready(pg_relu(x))
    y_ref = jnp.maximum(x, 0.0)
    assert y.shape == x.shape and y.dtype == x.dtype
    assert jnp.allclose(y, y_ref), "mismatch vs relu reference (main shape)"

    # Odd-sized input to exercise the pad-and-slice path (no single-block fallback).
    x_odd = jax.random.normal(jax.random.PRNGKey(1), (3, 5, 7), dtype=jnp.float32)
    y_odd = jax.block_until_ready(pg_relu(x_odd))
    assert y_odd.shape == x_odd.shape and y_odd.dtype == x_odd.dtype
    assert jnp.allclose(y_odd, jnp.maximum(x_odd, 0.0)), "mismatch (odd shape)"

    # bf16 path (different sublane packing multiple).
    x_bf = jax.random.normal(jax.random.PRNGKey(2), (2, 4, 16, 16)).astype(jnp.bfloat16)
    y_bf = jax.block_until_ready(pg_relu(x_bf))
    assert y_bf.dtype == jnp.bfloat16
    assert jnp.allclose(
        y_bf.astype(jnp.float32), jnp.maximum(x_bf, 0).astype(jnp.float32)
    ), "mismatch (bf16)"

    print("KERNEL_OK")
</pallas_src>

<mosaic_0001>
module attributes {stable_mosaic.version = 11 : i64} {
  func.func @_pg_relu_kernel(%arg0: i32, %arg1: memref<8x256xf32, #tpu.memory_space<vmem>>, %arg2: memref<8x256xf32, #tpu.memory_space<vmem>>) attributes {dimension_semantics = [#tpu.dimension_semantics<parallel>], iteration_bounds = array<i64: 1>, scalar_prefetch = 0 : i64, scratch_operands = 0 : i64, tpu.core_type = #tpu.core_type<tc>, window_params = [{transform_indices = @transform_0, window_bounds = array<i64: 8, 256>}, {transform_indices = @transform_1, window_bounds = array<i64: 8, 256>}]} {
    %c0 = arith.constant 0 : index
    %c0_0 = arith.constant 0 : index
    %0 = vector.load %arg1[%c0, %c0_0] : memref<8x256xf32, #tpu.memory_space<vmem>>, vector<8x256xf32>
    %cst = arith.constant 0.000000e+00 : f32
    %1 = vector.broadcast %cst : f32 to vector<8x256xf32>
    %2 = arith.maximumf %0, %1 : vector<8x256xf32>
    %c0_1 = arith.constant 0 : index
    %c0_2 = arith.constant 0 : index
    %3 = vector.load %arg2[%c0_1, %c0_2] : memref<8x256xf32, #tpu.memory_space<vmem>>, vector<8x256xf32>
    tpu.vector_store %arg2[%c0_1, %c0_2], %2 {strides = array<i32>} : memref<8x256xf32, #tpu.memory_space<vmem>>, vector<8x256xf32>,
    return
  }
  func.func @transform_0(%arg0: i32) -> (i32, i32) {
    %c0_i32 = arith.constant 0 : i32
    %c0_i32_0 = arith.constant 0 : i32
    return %arg0, %c0_i32 : i32, i32
  }
  func.func @transform_1(%arg0: i32) -> (i32, i32) {
    %c0_i32 = arith.constant 0 : i32
    %c0_i32_0 = arith.constant 0 : i32
    return %arg0, %c0_i32 : i32, i32
  }
}

</mosaic_0001>

<llo_original>
// kernel: tpu_custom_call.1
$region0: #{tpu_custom_call.1}
  #allocation0 [shape = 'u32[]', space=smem, size = 0x4, offset = 0x4, fixed_abs, tag = 'smem constant byte address 0x4 - core index']
  #allocation1 [shape = 'u32[72,128]{1,0:T(1,128)}', space=vmem, size = 0x9000, scoped, tag = 'internal scratch']
  %s0 = inlined_call_operand.hbm [shape: f32[8,256], index: 0, kind: input, shape index: {}]
  %s1 = inlined_call_operand.hbm [shape: f32[8,256], index: 1, kind: output, shape index: {}]
  %s2 = sld [smem:[#allocation0]]
  $region18: #{tpu_custom_call.1} parent=0
    _
  %s4 = ssub.s32 1, %s2
  %s5 = scalar_select 0, %s4, %s2
  $region1: #{tpu_custom_call.1} parent=0
    #allocation2 [shape = 'u8[8192]{0}', space=vmem, size = 0x2000, scoped, tag = 'input window, operand 0, single buffered']
    #allocation3 [shape = 's32[1]{0}', space=sflag, size = 0x4, scoped, tag = 'scoped memory for tpu_custom_call.1']
    #allocation4 [shape = 's32[1]{0}', space=sflag, size = 0x4, scoped, tag = 'scoped memory for tpu_custom_call.1']
    #allocation5 [shape = 'u8[8192]{0}', space=vmem, size = 0x2000, scoped, tag = 'output window, operand 0, single buffered']
    %6 = vsyncpa [#allocation3], 0
    %7 = vsyncpa [#allocation4], 0
    // Predicated region
    $region2: #{tpu_custom_call.1} parent=1 // pred_check
      _
    $region3: #{tpu_custom_call.1} parent=1 // pred_check_branch
      %9 = sbr.rel (0) target = $region5
    $region4: #{tpu_custom_call.1} parent=1 // pred_region
      %11 = vsyncadd [#allocation3], 0
      %s13 = sshll.u32 %s0, 4
      %s14 = int_to_ptr.hbm [resolvable:$true] %s13
      %s15 = sshll.u32 [#allocation2], 4
      %s16 = int_to_ptr.vmem [resolvable:$true] %s15
      %18 = dma.hbm_to_vmem [thread:$0]  %s14, 256, %s16, [#allocation3]
    $region5: #{tpu_custom_call.1} parent=1 // pred_fallthru
      _
    // Predicated region
    $region6: #{tpu_custom_call.1} parent=1 // pred_check
      _
    $region7: #{tpu_custom_call.1} parent=1 // pred_check_branch
      %20 = sbr.rel (0) target = $region9
    $region8: #{tpu_custom_call.1} parent=1 // pred_region
      %22 = dma.done [#allocation3], 256
    $region9: #{tpu_custom_call.1} parent=1 // pred_fallthru
      _
    %v23 = vld [vmem:[#allocation2] sm:$0xff]
    %v24 = vld [vmem:[#allocation2 + $0x8] sm:$0xff]
    %v25 = vmax.f32 %v23, 0.0
    %v26 = vmax.f32 %v24, 0.0
    %27 = vst [vmem:[#allocation5] sm:$0xff] %v25
    %28 = vst [vmem:[#allocation5 + $0x8] sm:$0xff] %v26
    // Predicated region
    $region10: #{tpu_custom_call.1} parent=1 // pred_check
      _
    $region11: #{tpu_custom_call.1} parent=1 // pred_check_branch
      %30 = sbr.rel (0) target = $region13
    $region12: #{tpu_custom_call.1} parent=1 // pred_region
      %32 = vsyncadd [#allocation4], 0
      %s34 = sshll.u32 [#allocation5], 4
      %s35 = int_to_ptr.vmem [resolvable:$true] %s34
      %s36 = sshll.u32 %s1, 4
      %s37 = int_to_ptr.hbm [resolvable:$true] %s36
      %39 = dma.vmem_to_hbm [thread:$0]  %s35, 256, %s37, [#allocation4]
    $region13: #{tpu_custom_call.1} parent=1 // pred_fallthru
      _
    // Predicated region
    $region14: #{tpu_custom_call.1} parent=1 // pred_check
      _
    $region15: #{tpu_custom_call.1} parent=1 // pred_check_branch
      %41 = sbr.rel (0) target = $region17
    $region16: #{tpu_custom_call.1} parent=1 // pred_region
      %43 = dma.done [#allocation4], 256
    $region17: #{tpu_custom_call.1} parent=1 // pred_fallthru
      _
    %44 = vsyncpa [#allocation3], 1
    %45 = vsyncpa [#allocation4], 1

</llo_original>
